<compile_context>
chip_gen: v5e
topology: v5e:2x2
jax: 0.10.0
libtpu: 0.0.40
codegen_flags: <defaults>
</compile_context>

<pallas_src>
import functools

import jax
import jax.numpy as jnp
from jax import lax
from jax.experimental import pallas as pl
from jax.experimental.pallas import tpu as pltpu

LANES = 128


def _min_sublanes(dtype):
    # Sublane granularity by packing: f32 -> 8, bf16/f16 -> 16, int8/fp8 -> 32.
    return max(8, 32 // jnp.dtype(dtype).itemsize)


def _tpu_config():
    """(num_cores, max_tile_rows, vmem_limit_bytes) per TPU generation."""
    try:
        kind = jax.devices()[0].device_kind.lower()
    except Exception:
        kind = ""
    if "v7" in kind:
        # 2 TensorCores/chip, 64 MiB VMEM/TC, ~3.2 TB/s HBM: biggest blocks that fit.
        # 8192x128 f32 = 4 MiB/input; 2 inputs x 2 buffers = 16 MiB << 48 MiB limit.
        return 2, 8192, 48 << 20
    # v5e / v6e: single TensorCore. 4096x128 f32 blocks (2 MiB/input, 8 MiB total
    # double-buffered) fit the default scoped-VMEM limit (16 / 32 MiB).
    return 1, 4096, None


def _peak_aware_kernel(xp_ref, yt_ref, out_ref, acc_ref, *,
                       ts, rows, block_rows, num_blocks, steps_per_core,
                       last_ragged, has_duplicate):
    c = pl.program_id(0)   # core / outer-parallel index
    i = pl.program_id(1)   # reduction step within this core
    blk = c * steps_per_core + i

    @pl.when(i == 0)
    def _():
        acc_ref[...] = jnp.zeros_like(acc_ref)

    def accumulate(mask_rows):
        y_pred = xp_ref[...].astype(jnp.float32)
        y_true = yt_ref[...].astype(jnp.float32)
        diff = y_pred - y_true
        sq = jnp.where(y_true > ts, diff * diff, jnp.float32(0.0))
        if mask_rows:
            # Only the final (ragged) block pays for the iota/compare mask:
            # Pallas-fetched rows beyond `rows` hold unspecified data.
            row = lax.broadcasted_iota(jnp.int32, (block_rows, LANES), 0)
            sq = jnp.where(blk * block_rows + row < rows, sq, jnp.float32(0.0))
        # Reduce (block_rows,128) -> (8,128) with a pure-VPU vreg-add tree so the
        # persistent accumulator (and its per-step load/store) is one vreg wide.
        acc_ref[...] += sq.reshape(block_rows // 8, 8, LANES).sum(axis=0)

    if last_ragged:
        @pl.when(blk < num_blocks - 1)
        def _():
            accumulate(False)          # fast path: no element mask

        @pl.when(blk == num_blocks - 1)
        def _():
            accumulate(True)           # masked path: ragged last block only
    elif has_duplicate:
        # Whole-block scalar guard for the second core's clamped duplicate block.
        @pl.when(blk < num_blocks)
        def _():
            accumulate(False)
    else:
        accumulate(False)

    @pl.when(i == steps_per_core - 1)
    def _():
        out_ref[0, 0] = jnp.sum(acc_ref[...])   # single cross-lane reduce per core


def peak_aware_loss(x, y, *, Ts=0.4):
    y_pred = jnp.ravel(x)
    y_true = jnp.ravel(y)
    n_total = y_pred.shape[0]

    num_cores, max_tile_rows, vmem_limit = _tpu_config()

    sub = max(_min_sublanes(y_pred.dtype), _min_sublanes(y_true.dtype))
    quantum = sub * LANES
    aligned_n = (n_total // quantum) * quantum
    tail = n_total - aligned_n

    def _tail_sum(yp, yt):
        yp = yp.astype(jnp.float32)
        yt = yt.astype(jnp.float32)
        d = yp - yt
        return jnp.sum(jnp.where(yt > jnp.float32(Ts), d * d, jnp.float32(0.0)))

    if aligned_n == 0:
        # Whole array smaller than one (sub,128) tile: trivial wrapper reduce.
        return jnp.sqrt(_tail_sum(y_pred, y_true) / jnp.float32(n_total))

    if tail:
        # TODO(synk): the prefix slice still copies the aligned part for ragged
        # sizes; a ragged 1-D BoundedSlice BlockSpec would make it fully zero-copy.
        kp, kt = y_pred[:aligned_n], y_true[:aligned_n]
        tail_sum = _tail_sum(y_pred[aligned_n:], y_true[aligned_n:])
    else:
        kp, kt = y_pred, y_true          # zero-copy
        tail_sum = jnp.float32(0.0)

    rows = aligned_n // LANES            # multiple of `sub` (hence of 8)
    kp2 = kp.reshape(rows, LANES)        # zero-copy reshape
    kt2 = kt.reshape(rows, LANES)

    block_rows = min(max_tile_rows, rows)          # multiple of `sub` by construction
    num_blocks = pl.cdiv(rows, block_rows)
    steps_per_core = pl.cdiv(num_blocks, num_cores)
    has_duplicate = num_cores * steps_per_core > num_blocks
    last_ragged = (rows % block_rows) != 0

    if has_duplicate:
        def in_map(c, i):
            # Clamp so the DMA never reads past the array; the whole-block
            # pl.when guard skips the duplicated logical block.
            return (jnp.minimum(c * steps_per_core + i, num_blocks - 1), 0)
    else:
        def in_map(c, i):
            return (c * steps_per_core + i, 0)

    kernel = functools.partial(
        _peak_aware_kernel,
        ts=float(Ts), rows=int(rows), block_rows=int(block_rows),
        num_blocks=int(num_blocks), steps_per_core=int(steps_per_core),
        last_ragged=bool(last_ragged), has_duplicate=bool(has_duplicate))

    partials = pl.pallas_call(
        kernel,
        out_shape=jax.ShapeDtypeStruct((num_cores, 1), jnp.float32),
        grid_spec=pltpu.PrefetchScalarGridSpec(
            num_scalar_prefetch=0,
            grid=(num_cores, steps_per_core),
            in_specs=[
                pl.BlockSpec((block_rows, LANES), in_map),
                pl.BlockSpec((block_rows, LANES), in_map),
            ],
            out_specs=pl.BlockSpec((1, 1), lambda c, i: (c, 0),
                                   memory_space=pltpu.MemorySpace.SMEM),
            scratch_shapes=[pltpu.VMEM((8, LANES), jnp.float32)],
        ),
        compiler_params=pltpu.CompilerParams(
            dimension_semantics=("parallel", "arbitrary"),
            vmem_limit_bytes=vmem_limit),
    )(kp2, kt2)

    return jnp.sqrt((jnp.sum(partials) + tail_sum) / jnp.float32(n_total))


def _reference(x, y, Ts=0.4):
    yp = jnp.ravel(x).astype(jnp.float32)
    yt = jnp.ravel(y).astype(jnp.float32)
    w = jnp.where(yt > Ts, jnp.float32(1.0), jnp.float32(0.0))
    return jnp.sqrt(jnp.mean(w * (yp - yt) ** 2))


if __name__ == "__main__":
    key = jax.random.PRNGKey(0)
    kx, ky = jax.random.split(key)
    # NCHW inputs (predictions and targets in [0, 1])
    x = jax.random.uniform(kx, (2, 4, 16, 16), dtype=jnp.float32)
    y = jax.random.uniform(ky, (2, 4, 16, 16), dtype=jnp.float32)

    out = peak_aware_loss(x, y)
    jax.block_until_ready(out)

    ref = _reference(x, y)
    assert jnp.allclose(out, ref, rtol=1e-5, atol=1e-6), (out, ref)

    print("KERNEL_OK")
</pallas_src>

<mosaic_0001>
module attributes {stable_mosaic.version = 11 : i64} {
  func.func @_peak_aware_kernel(%arg0: i32, %arg1: i32, %arg2: memref<16x128xf32, #tpu.memory_space<vmem>>, %arg3: memref<16x128xf32, #tpu.memory_space<vmem>>, %arg4: memref<1x1xf32, #tpu.memory_space<smem>>, %arg5: memref<8x128xf32, #tpu.memory_space<vmem>>) attributes {dimension_semantics = [#tpu.dimension_semantics<parallel>, #tpu.dimension_semantics<arbitrary>], iteration_bounds = array<i64: 1, 1>, scalar_prefetch = 0 : i64, scratch_operands = 1 : i64, tpu.core_type = #tpu.core_type<tc>, window_params = [{transform_indices = @transform_0, window_bounds = array<i64: 16, 128>}, {transform_indices = @transform_1, window_bounds = array<i64: 16, 128>}, {transform_indices = @transform_2, window_bounds = array<i64: 1, 1>}]} {
    %c0_i32 = arith.constant 0 : i32
    %0 = arith.cmpi eq, %arg1, %c0_i32 : i32
    %1 = arith.extui %0 : i1 to i32
    %c0_i32_0 = arith.constant 0 : i32
    %2 = arith.cmpi ne, %1, %c0_i32_0 : i32
    scf.if %2 {
      %cst_12 = arith.constant 0.000000e+00 : f32
      %19 = vector.broadcast %cst_12 : f32 to vector<8x128xf32>
      %c0_13 = arith.constant 0 : index
      %c0_14 = arith.constant 0 : index
      %20 = vector.load %arg5[%c0_13, %c0_14] : memref<8x128xf32, #tpu.memory_space<vmem>>, vector<8x128xf32>
      tpu.vector_store %arg5[%c0_13, %c0_14], %19 {strides = array<i32>} : memref<8x128xf32, #tpu.memory_space<vmem>>, vector<8x128xf32>,
    } else {
    }
    %c0 = arith.constant 0 : index
    %c0_1 = arith.constant 0 : index
    %3 = vector.load %arg2[%c0, %c0_1] : memref<16x128xf32, #tpu.memory_space<vmem>>, vector<16x128xf32>
    %c0_2 = arith.constant 0 : index
    %c0_3 = arith.constant 0 : index
    %4 = vector.load %arg3[%c0_2, %c0_3] : memref<16x128xf32, #tpu.memory_space<vmem>>, vector<16x128xf32>
    %5 = arith.subf %3, %4 : vector<16x128xf32>
    %cst = arith.constant 4.000000e-01 : f32
    %6 = vector.broadcast %cst : f32 to vector<16x128xf32>
    %7 = arith.cmpf ogt, %4, %6 : vector<16x128xf32>
    %8 = arith.mulf %5, %5 : vector<16x128xf32>
    %cst_4 = arith.constant 0.000000e+00 : f32
    %9 = vector.broadcast %cst_4 : f32 to vector<16x128xf32>
    %10 = arith.select %7, %8, %9 : vector<16x128xi1>, vector<16x128xf32>
    %c0_5 = arith.constant 0 : index
    %c0_6 = arith.constant 0 : index
    %11 = vector.load %arg5[%c0_5, %c0_6] : memref<8x128xf32, #tpu.memory_space<vmem>>, vector<8x128xf32>
    %12 = vector.shape_cast %10 : vector<16x128xf32> to vector<2x8x128xf32>
    %cst_7 = arith.constant dense<0.000000e+00> : vector<8x128xf32>
    %13 = vector.multi_reduction <add>, %12, %cst_7 [0] : vector<2x8x128xf32> to vector<8x128xf32>
    %14 = arith.addf %11, %13 : vector<8x128xf32>
    %c0_8 = arith.constant 0 : index
    %c0_9 = arith.constant 0 : index
    %15 = vector.load %arg5[%c0_8, %c0_9] : memref<8x128xf32, #tpu.memory_space<vmem>>, vector<8x128xf32>
    tpu.vector_store %arg5[%c0_8, %c0_9], %14 {strides = array<i32>} : memref<8x128xf32, #tpu.memory_space<vmem>>, vector<8x128xf32>,
    %c0_i32_10 = arith.constant 0 : i32
    %16 = arith.cmpi eq, %arg1, %c0_i32_10 : i32
    %17 = arith.extui %16 : i1 to i32
    %c0_i32_11 = arith.constant 0 : i32
    %18 = arith.cmpi ne, %17, %c0_i32_11 : i32
    scf.if %18 {
      %c0_12 = arith.constant 0 : index
      %c0_13 = arith.constant 0 : index
      %19 = vector.load %arg5[%c0_12, %c0_13] : memref<8x128xf32, #tpu.memory_space<vmem>>, vector<8x128xf32>
      %20 = vector.shape_cast %19 : vector<8x128xf32> to vector<1x8x128xf32>
      %cst_14 = arith.constant dense<0.000000e+00> : vector<1xf32>
      %21 = vector.multi_reduction <add>, %20, %cst_14 [1, 2] : vector<1x8x128xf32> to vector<1xf32>
      %22 = vector.shape_cast %21 : vector<1xf32> to vector<1x1x1xf32>
      %23 = vector.extract %22[0, 0, 0] : f32 from vector<1x1x1xf32>
      %c0_15 = arith.constant 0 : index
      %c0_16 = arith.constant 0 : index
      %24 = memref.load %arg4[%c0_15, %c0_16] : memref<1x1xf32, #tpu.memory_space<smem>>
      memref.store %23, %arg4[%c0_15, %c0_16] : memref<1x1xf32, #tpu.memory_space<smem>>
    } else {
    }
    return
  }
  func.func @transform_0(%arg0: i32, %arg1: i32) -> (i32, i32) {
    %c1_i32 = arith.constant 1 : i32
    %0 = arith.muli %arg0, %c1_i32 : i32
    %1 = arith.addi %0, %arg1 : i32
    %c0_i32 = arith.constant 0 : i32
    %c0_i32_0 = arith.constant 0 : i32
    return %1, %c0_i32 : i32, i32
  }
  func.func @transform_1(%arg0: i32, %arg1: i32) -> (i32, i32) {
    %c1_i32 = arith.constant 1 : i32
    %0 = arith.muli %arg0, %c1_i32 : i32
    %1 = arith.addi %0, %arg1 : i32
    %c0_i32 = arith.constant 0 : i32
    %c0_i32_0 = arith.constant 0 : i32
    return %1, %c0_i32 : i32, i32
  }
  func.func @transform_2(%arg0: i32, %arg1: i32) -> (i32, i32) {
    %c0_i32 = arith.constant 0 : i32
    %c0_i32_0 = arith.constant 0 : i32
    return %arg0, %c0_i32 : i32, i32
  }
}

</mosaic_0001>

<llo_original>
// kernel: tpu_custom_call.1
$region0: #{tpu_custom_call.1}
  #allocation0 [shape = 'u32[]', space=smem, size = 0x4, offset = 0x4, fixed_abs, tag = 'smem constant byte address 0x4 - core index']
  #allocation1 [shape = 'u32[72,128]{1,0:T(1,128)}', space=vmem, size = 0x9000, scoped, tag = 'internal scratch']
  #allocation2 [shape = 'f32[8,128]{1,0:T(8,128)}', space=vmem, size = 0x1000, scoped, tag = 'scratch operand']
  %s0 = inlined_call_operand.hbm [shape: f32[16,128], index: 0, kind: input, shape index: {}]
  %s1 = inlined_call_operand.hbm [shape: f32[16,128], index: 1, kind: input, shape index: {}]
  %s2 = inlined_call_operand.hbm [shape: f32[1,1], index: 2, kind: output, shape index: {}]
  %s3 = sld [smem:[#allocation0]]
  $region34: #{tpu_custom_call.1} parent=0
    _
  %s5 = ssub.s32 1, %s3
  %s6 = scalar_select 0, %s5, %s3
  $region1: #{tpu_custom_call.1} parent=0
    #allocation3 [shape = 'u8[8192]{0}', space=vmem, size = 0x2000, scoped, tag = 'input window, operand 0, single buffered']
    #allocation4 [shape = 's32[1]{0}', space=sflag, size = 0x4, scoped, tag = 'scoped memory for tpu_custom_call.1']
    #allocation5 [shape = 's32[1]{0}', space=sflag, size = 0x4, scoped, tag = 'scoped memory for tpu_custom_call.1']
    #allocation6 [shape = 'u8[8192]{0}', space=vmem, size = 0x2000, scoped, tag = 'input window, operand 1, single buffered']
    #allocation7 [shape = 's32[1]{0}', space=sflag, size = 0x4, scoped, tag = 'scoped memory for tpu_custom_call.1']
    #allocation8 [shape = 'u8[512]{0}', space=smem, size = 0x200, scoped, tag = 'output window, operand 0, single buffered']
    %7 = vsyncpa [#allocation4], 0
    %8 = vsyncpa [#allocation7], 0
    %9 = vsyncpa [#allocation5], 0
    // Predicated region
    $region2: #{tpu_custom_call.1} parent=1 // pred_check
      _
    $region3: #{tpu_custom_call.1} parent=1 // pred_check_branch
      %11 = sbr.rel (0) target = $region5
    $region4: #{tpu_custom_call.1} parent=1 // pred_region
      %s12 = sadd.s32 0, 0
      %s13 = smul.u32 2, %s12
      %15 = vsyncadd [#allocation4], 0
      %s16 = smul.addr %s13, 8
      %s17 = scalar_lea.hbm %s0, %s16
      %s18 = sshll.u32 %s17, 4
      %s19 = int_to_ptr.hbm [resolvable:$true] %s18
      %s20 = sshll.u32 [#allocation3], 4
      %s21 = int_to_ptr.vmem [resolvable:$true] %s20
      %26 = dma.hbm_to_vmem [thread:$0]  %s19, 256, %s21, [#allocation4], 128, 128, 8
    $region5: #{tpu_custom_call.1} parent=1 // pred_fallthru
      _
    // Predicated region
    $region6: #{tpu_custom_call.1} parent=1 // pred_check
      _
    $region7: #{tpu_custom_call.1} parent=1 // pred_check_branch
      %28 = sbr.rel (0) target = $region9
    $region8: #{tpu_custom_call.1} parent=1 // pred_region
      %s29 = sadd.s32 0, 0
      %s30 = smul.u32 2, %s29
      %32 = vsyncadd [#allocation7], 0
      %s33 = smul.addr %s30, 8
      %s34 = scalar_lea.hbm %s1, %s33
      %s35 = sshll.u32 %s34, 4
      %s36 = int_to_ptr.hbm [resolvable:$true] %s35
      %s37 = sshll.u32 [#allocation6], 4
      %s38 = int_to_ptr.vmem [resolvable:$true] %s37
      %43 = dma.hbm_to_vmem [thread:$0]  %s36, 256, %s38, [#allocation7], 128, 128, 8
    $region9: #{tpu_custom_call.1} parent=1 // pred_fallthru
      _
    // Predicated region
    $region10: #{tpu_custom_call.1} parent=1 // pred_check
      _
    $region11: #{tpu_custom_call.1} parent=1 // pred_check_branch
      %45 = sbr.rel (0) target = $region13
    $region12: #{tpu_custom_call.1} parent=1 // pred_region
      %47 = dma.done [#allocation4], 256
    $region13: #{tpu_custom_call.1} parent=1 // pred_fallthru
      _
    // Predicated region
    $region14: #{tpu_custom_call.1} parent=1 // pred_check
      _
    $region15: #{tpu_custom_call.1} parent=1 // pred_check_branch
      %49 = sbr.rel (0) target = $region17
    $region16: #{tpu_custom_call.1} parent=1 // pred_region
      %51 = dma.done [#allocation7], 256
    $region17: #{tpu_custom_call.1} parent=1 // pred_fallthru
      _
    %s52 = sadd.s32 0, 0
    %s53 = smul.u32 2, %s52
    %s54 = sadd.s32 0, 0
    %s55 = smul.u32 2, %s54
    %p56 = scmp.eq.s32.totalorder 0, 0
    // Predicated region
    $region18: #{tpu_custom_call.1} parent=1 // pred_check
      %p57 = pneg %p56
    $region19: #{tpu_custom_call.1} parent=1 // pred_check_branch
      %59 = sbr.rel (%p57) target = $region21
    $region20: #{tpu_custom_call.1} parent=1 // pred_region
      %60 = vst [vmem:[#allocation2] sm:$0xff] 0.0
    $region21: #{tpu_custom_call.1} parent=1 // pred_fallthru
      _
    %v61 = vld [vmem:[#allocation3] sm:$0xff]
    %v62 = vld [vmem:[#allocation3 + $0x8] sm:$0xff]
    %v63 = vld [vmem:[#allocation6] sm:$0xff]
    %v64 = vld [vmem:[#allocation6 + $0x8] sm:$0xff]
    %v65 = vsub.f32 %v61, %v63
    %v66 = vsub.f32 %v62, %v64
    %vm67 = vcmp.gt.f32.partialorder %v63, 0.4
    %vm68 = vcmp.gt.f32.partialorder %v64, 0.4
    %v69 = vmul.f32 %v65, %v65
    %v70 = vmul.f32 %v66, %v66
    %v71 = vsel %vm67, %v69, 0.0
    %v72 = vsel %vm68, %v70, 0.0
    %v73 = vld [vmem:[#allocation2] sm:$0xff]
    %v74 = vadd.f32 %v71, %v72
    %v75 = vadd.f32 %v73, %v74
    %76 = vst [vmem:[#allocation2] sm:$0xff] %v75
    // Predicated region
    $region22: #{tpu_custom_call.1} parent=1 // pred_check
      %p77 = pneg %p56
    $region23: #{tpu_custom_call.1} parent=1 // pred_check_branch
      %79 = sbr.rel (%p77) target = $region25
    $region24: #{tpu_custom_call.1} parent=1 // pred_region
      %v80 = vld [vmem:[#allocation2] sm:$0xff]
      %81 = vadd.xlane.f32.xlu0 %v80
      %v82 = vpop.xlane.xlu0 %81
      %v83 = vrot.slane %v82, 4
      %v84 = vadd.f32 %v82, %v83
      %v85 = vrot.slane %v84, 2
      %v86 = vadd.f32 %v84, %v85
      %v87 = vrot.slane %v86, 1
      %v88 = vadd.f32 %v86, %v87
      %s89 = vtos %v88
      %s90 = scalar_lea.smem [#allocation8], 0
      %91 = sst [smem:[%s90]] %s89
    $region25: #{tpu_custom_call.1} parent=1 // pred_fallthru
      _
    // Predicated region
    $region26: #{tpu_custom_call.1} parent=1 // pred_check
      _
    $region27: #{tpu_custom_call.1} parent=1 // pred_check_branch
      %93 = sbr.rel (0) target = $region29
    $region28: #{tpu_custom_call.1} parent=1 // pred_region
      %95 = vsyncadd [#allocation5], 0
      %s97 = sshll.u32 %s2, 4
      %s98 = int_to_ptr.hbm [resolvable:$true] %s97
      %100 = dma.smem_to_hbm [#allocation8], 16, %s98, [#allocation5]
    $region29: #{tpu_custom_call.1} parent=1 // pred_fallthru
      _
    // Predicated region
    $region30: #{tpu_custom_call.1} parent=1 // pred_check
      _
    $region31: #{tpu_custom_call.1} parent=1 // pred_check_branch
      %102 = sbr.rel (0) target = $region33
    $region32: #{tpu_custom_call.1} parent=1 // pred_region
      %104 = dma.done [#allocation5], 16
    $region33: #{tpu_custom_call.1} parent=1 // pred_fallthru
      _
    %105 = sfence
    %106 = vsyncpa [#allocation4], 1
    %107 = vsyncpa [#allocation7], 1
    %108 = vsyncpa [#allocation5], 1

</llo_original>
